<compile_context>
chip_gen: v7x
topology: tpu7x:2x2x1
jax: 0.10.0
libtpu: 0.0.40
codegen_flags: <defaults>
</compile_context>

<pallas_src>
import functools

import jax
import jax.numpy as jnp
from jax.experimental import pallas as pl
from jax.experimental.pallas import tpu as pltpu

_SUB, _LANE = 8, 128  # one f32 vreg tile


def _affine_kernel(slab_ref, o_ref, *, k_dim):
    # slab_ref: (3, 8, 128) f32 — [0] = x padded, [1] = param padded,
    #                             [2] = my_buffer padded (zeros elsewhere).
    x = slab_ref[0]   # (8, 128): x in [0:M, 0:K]
    w = slab_ref[1]   # (8, 128): param in [0:K, 0:N]
    b = slab_ref[2]   # (8, 128): my_buffer in [0:M, 0:N]

    # VPU contraction, unrolled over K (=3). Every operand stays vreg-shaped:
    # (8,1) * (1,128) broadcasts to (8,128); padded regions stay exactly zero.
    acc = b
    for k in range(k_dim):
        acc = acc + x[:, k:k + 1] * w[k:k + 1, :]

    # Single lane-dense (8,128) store; rows/cols outside (M,N) are zero.
    o_ref[...] = acc


def my_model_forward(x, param, my_buffer):
    """y = x @ param + my_buffer, computed inside a single Pallas kernel."""
    M, K = x.shape
    Kw, N = param.shape
    assert K == Kw and my_buffer.shape == (M, N)
    assert M <= _SUB and K <= _SUB and max(K, N) <= _LANE

    # Pack all three operands into one pre-padded (3, 8, 128) slab -> one DMA.
    slab = jnp.zeros((3, _SUB, _LANE), jnp.float32)
    slab = slab.at[0, :M, :K].set(x.astype(jnp.float32))
    slab = slab.at[1, :K, :N].set(param.astype(jnp.float32))
    slab = slab.at[2, :M, :N].set(my_buffer.astype(jnp.float32))

    out_pad = pl.pallas_call(
        functools.partial(_affine_kernel, k_dim=K),
        out_shape=jax.ShapeDtypeStruct((_SUB, _LANE), jnp.float32),
        in_specs=[pl.BlockSpec(memory_space=pltpu.MemorySpace.VMEM)],
        out_specs=pl.BlockSpec(memory_space=pltpu.MemorySpace.VMEM),
    )(slab)

    return out_pad[:M, :N]


if __name__ == "__main__":
    key = jax.random.PRNGKey(0)
    k_buf, k_param, k_x = jax.random.split(key, 3)

    # Deterministic "randn"-style initialization matching the module's shapes.
    my_buffer = jax.random.normal(k_buf, (2, 3), dtype=jnp.float32)
    param = jax.random.normal(k_param, (3, 3), dtype=jnp.float32)

    # Example input consistent with the param/buffer shapes.
    x = jax.random.normal(k_x, (2, 3), dtype=jnp.float32)

    fwd = jax.jit(my_model_forward)
    y = jax.block_until_ready(fwd(x, param, my_buffer))

    # Reference check in plain JAX.
    ref = x @ param + my_buffer
    assert y.shape == (2, 3)
    assert jnp.allclose(y, ref, atol=1e-5, rtol=1e-5)

    print("KERNEL_OK")
</pallas_src>

<mosaic_0001>
module attributes {stable_mosaic.version = 11 : i64} {
  func.func @_affine_kernel(%arg0: memref<3x8x128xf32, #tpu.memory_space<vmem>>, %arg1: memref<8x128xf32, #tpu.memory_space<vmem>>) attributes {dimension_semantics = [], scalar_prefetch = 0 : i64, scratch_operands = 0 : i64, tpu.core_type = #tpu.core_type<tc>} {
    %c0 = arith.constant 0 : index
    %c0_0 = arith.constant 0 : index
    %c0_1 = arith.constant 0 : index
    %0 = vector.load %arg0[%c0, %c0_0, %c0_1] : memref<3x8x128xf32, #tpu.memory_space<vmem>>, vector<1x8x128xf32>
    %1 = vector.shape_cast %0 : vector<1x8x128xf32> to vector<8x128xf32>
    %c1 = arith.constant 1 : index
    %c0_2 = arith.constant 0 : index
    %c0_3 = arith.constant 0 : index
    %2 = vector.load %arg0[%c1, %c0_2, %c0_3] : memref<3x8x128xf32, #tpu.memory_space<vmem>>, vector<1x8x128xf32>
    %3 = vector.shape_cast %2 : vector<1x8x128xf32> to vector<8x128xf32>
    %c2 = arith.constant 2 : index
    %c0_4 = arith.constant 0 : index
    %c0_5 = arith.constant 0 : index
    %4 = vector.load %arg0[%c2, %c0_4, %c0_5] : memref<3x8x128xf32, #tpu.memory_space<vmem>>, vector<1x8x128xf32>
    %5 = vector.shape_cast %4 : vector<1x8x128xf32> to vector<8x128xf32>
    %6 = vector.extract_strided_slice %1 {offsets = [0, 0], sizes = [8, 1], strides = [1, 1]} : vector<8x128xf32> to vector<8x1xf32>
    %7 = vector.extract_strided_slice %3 {offsets = [0, 0], sizes = [1, 128], strides = [1, 1]} : vector<8x128xf32> to vector<1x128xf32>
    %8 = vector.broadcast %6 : vector<8x1xf32> to vector<8x128xf32>
    %9 = vector.broadcast %7 : vector<1x128xf32> to vector<8x128xf32>
    %10 = arith.mulf %8, %9 : vector<8x128xf32>
    %11 = arith.addf %5, %10 : vector<8x128xf32>
    %12 = vector.extract_strided_slice %1 {offsets = [0, 1], sizes = [8, 1], strides = [1, 1]} : vector<8x128xf32> to vector<8x1xf32>
    %13 = vector.extract_strided_slice %3 {offsets = [1, 0], sizes = [1, 128], strides = [1, 1]} : vector<8x128xf32> to vector<1x128xf32>
    %14 = vector.broadcast %12 : vector<8x1xf32> to vector<8x128xf32>
    %15 = vector.broadcast %13 : vector<1x128xf32> to vector<8x128xf32>
    %16 = arith.mulf %14, %15 : vector<8x128xf32>
    %17 = arith.addf %11, %16 : vector<8x128xf32>
    %18 = vector.extract_strided_slice %1 {offsets = [0, 2], sizes = [8, 1], strides = [1, 1]} : vector<8x128xf32> to vector<8x1xf32>
    %19 = vector.extract_strided_slice %3 {offsets = [2, 0], sizes = [1, 128], strides = [1, 1]} : vector<8x128xf32> to vector<1x128xf32>
    %20 = vector.broadcast %18 : vector<8x1xf32> to vector<8x128xf32>
    %21 = vector.broadcast %19 : vector<1x128xf32> to vector<8x128xf32>
    %22 = arith.mulf %20, %21 : vector<8x128xf32>
    %23 = arith.addf %17, %22 : vector<8x128xf32>
    %c0_6 = arith.constant 0 : index
    %c0_7 = arith.constant 0 : index
    %24 = vector.load %arg1[%c0_6, %c0_7] : memref<8x128xf32, #tpu.memory_space<vmem>>, vector<8x128xf32>
    tpu.vector_store %arg1[%c0_6, %c0_7], %23 {strides = array<i32>} : memref<8x128xf32, #tpu.memory_space<vmem>>, vector<8x128xf32>,
    return
  }
}

</mosaic_0001>

<llo_original>
// kernel: my_model_forward.1
$region0: #{my_model_forward.1}
  #allocation0 [shape = 'u32[]', space=smem, size = 0x4, offset = 0x4, fixed_abs, tag = 'smem constant byte address 0x4 - core index']
  #allocation1 [shape = 'u32[144,128]{1,0:T(1,128)}', space=vmem, size = 0x12000, scoped, tag = 'internal scratch']
  %s0 = inlined_call_operand.vmem [shape: f32[3,8,128], index: 0, kind: input, shape index: {}]
  %s1 = inlined_call_operand.vmem [shape: f32[8,128], index: 1, kind: output, shape index: {}]
  %s2 = sld [smem:[#allocation0]]
  $region14: #{my_model_forward.1} parent=0
    _
  %s4 = ssub.s32 1, %s2
  %s5 = scalar_select 0, %s4, %s2
  // Predicated region
  $region2: #{my_model_forward.1} parent=0 // pred_check
    _
  $region3: #{my_model_forward.1} parent=0 // pred_check_branch
    %7 = sbr.rel (0) target = $region5
  $region4: #{my_model_forward.1} parent=0 // pred_region
    _
  $region5: #{my_model_forward.1} parent=0 // pred_fallthru
    _
  %v8 = vld [vmem:[%s0] sm:$0xff]
  %s9 = scalar_lea.vmem %s0, 8
  %v10 = vld [vmem:[%s9] sm:$0xff]
  %s11 = scalar_lea.vmem %s0, 16
  %v12 = vld [vmem:[%s11] sm:$0xff]
  %14 = vset.pattern.permute.xlu0 0
  %15 = vperm.xlu0 %14, %v8
  %v16 = vpop.permute.xlu0 %15
  %v18 = vlaneseq
  %v19 = vshrl.u32 %v18, 7
  %v20 = vsub.s32 0, %v19
  %v21 = vrot.slane %v10, %v20
  %v22 = vmul.f32 %v16, %v21
  %v23 = vadd.f32 %v12, %v22
  %24 = vset.pattern.permute.xlu0 1
  %25 = vperm.xlu0 %24, %v8
  %v26 = vpop.permute.xlu0 %25
  %v28 = vlaneseq
  %v29 = vshrl.u32 %v28, 7
  %v30 = vsub.s32 1, %v29
  %v31 = vrot.slane %v10, %v30
  %v32 = vmul.f32 %v26, %v31
  %v33 = vadd.f32 %v23, %v32
  %34 = vset.pattern.permute.xlu0 2
  %35 = vperm.xlu0 %34, %v8
  %v36 = vpop.permute.xlu0 %35
  %v38 = vlaneseq
  %v39 = vshrl.u32 %v38, 7
  %v40 = vsub.s32 2, %v39
  %v41 = vrot.slane %v10, %v40
  %v42 = vmul.f32 %v36, %v41
  %v43 = vadd.f32 %v33, %v42
  %44 = vst [vmem:[%s1] sm:$0xff] %v43
  // Predicated region
  $region6: #{my_model_forward.1} parent=0 // pred_check
    _
  $region7: #{my_model_forward.1} parent=0 // pred_check_branch
    %46 = sbr.rel (0) target = $region9
  $region8: #{my_model_forward.1} parent=0 // pred_region
    _
  $region9: #{my_model_forward.1} parent=0 // pred_fallthru
    _
  // Predicated region
  $region10: #{my_model_forward.1} parent=0 // pred_check
    _
  $region11: #{my_model_forward.1} parent=0 // pred_check_branch
    %48 = sbr.rel (0) target = $region13
  $region12: #{my_model_forward.1} parent=0 // pred_region
    _
  $region13: #{my_model_forward.1} parent=0 // pred_fallthru
    _

</llo_original>
